<compile_context>
chip_gen: v7x
topology: tpu7x:2x2x1
jax: 0.10.0
libtpu: 0.0.40
codegen_flags: <defaults>
</compile_context>

<pallas_src>
import jax
import jax.numpy as jnp
from jax import lax
from jax.experimental import pallas as pl
from jax.experimental.pallas import tpu as pltpu

INPUT_SIZE = 2   # input_size in LNN1.__init__
USE_BN = True    # corresponds to args.bn


def _lnn1_bn_kernel(gw_ref, bias_ref, x_ref, o_ref):
    # gw_ref:   SMEM (F,)  = gamma_f * w_f          (folded on host)
    # bias_ref: SMEM (1,)  = sum_f beta_f * w_f     (folded on host)
    # x_ref:    VMEM (F, N) — features on sublanes, batch on lanes
    # o_ref:    VMEM (1, N)
    n = x_ref.shape[1]
    f_dim = x_ref.shape[0]
    inv_n = jnp.float32(1.0 / n)

    acc = jnp.zeros((1, n), dtype=jnp.float32)
    # Static unroll over the (tiny) feature dimension; each row is one lane-wide
    # vector. BN stats are lane reductions (XLU); the "linear" layer is a
    # scalar*vector accumulate on the VPU — no MXU involved.
    for f in range(f_dim):
        row = x_ref[f:f + 1, :].astype(jnp.float32)           # (1, N)
        mean = jnp.sum(row, axis=1, keepdims=True) * inv_n     # batch mean
        c = row - mean                                         # centered
        var = jnp.sum(c * c, axis=1, keepdims=True) * inv_n    # biased variance
        # eps = 0 (matches the PyTorch module); constant feature or N==1 -> inf/NaN,
        # exactly like BatchNorm1d(eps=0) would.
        acc = acc + c * (lax.rsqrt(var) * gw_ref[f])
    o_ref[...] = acc + bias_ref[0]


def _lnn1_nobn_kernel(w_ref, x_ref, o_ref):
    # w_ref: SMEM (F,); x_ref: VMEM (F, N); o_ref: VMEM (1, N)
    n = x_ref.shape[1]
    acc = jnp.zeros((1, n), dtype=jnp.float32)
    for f in range(x_ref.shape[0]):
        acc = acc + x_ref[f:f + 1, :].astype(jnp.float32) * w_ref[f]
    o_ref[...] = acc


def lnn1_forward(x, w, gamma, beta, use_bn=USE_BN):
    """x: (N, F) float32 (already flattened).
    w: (F,) linear weight row (i.e. [-1, 1]); gamma, beta: (F,).
    Returns logits (N, 1) float32."""
    n, f = x.shape
    # Lane-major layout: batch on lanes, features on sublanes.
    x_t = jnp.transpose(x).astype(jnp.float32)                 # (F, N)

    smem_spec = pl.BlockSpec(memory_space=pltpu.MemorySpace.SMEM)
    vmem_spec = pl.BlockSpec(memory_space=pltpu.MemorySpace.VMEM)
    out_shape = jax.ShapeDtypeStruct((1, n), jnp.float32)

    if use_bn:
        # Fold affine + linear weight per feature on the host.
        gw = (gamma * w).astype(jnp.float32).reshape(f)        # (F,)
        bias = jnp.sum(beta * w).astype(jnp.float32).reshape(1)  # (1,)
        out_row = pl.pallas_call(
            _lnn1_bn_kernel,
            out_shape=out_shape,
            in_specs=[smem_spec, smem_spec, vmem_spec],
            out_specs=vmem_spec,
        )(gw, bias, x_t)
    else:
        out_row = pl.pallas_call(
            _lnn1_nobn_kernel,
            out_shape=out_shape,
            in_specs=[smem_spec, vmem_spec],
            out_specs=vmem_spec,
        )(w.astype(jnp.float32).reshape(f), x_t)

    return out_row.reshape(n, 1)


def lnn1_reference(x, w, gamma, beta, use_bn=USE_BN):
    x = x.astype(jnp.float32)
    if use_bn:
        mean = jnp.mean(x, axis=0, keepdims=True)
        var = jnp.mean((x - mean) ** 2, axis=0, keepdims=True)
        x = (x - mean) / jnp.sqrt(var)    # eps = 0
        x = x * gamma + beta
    return x @ w.reshape(-1, 1)


if __name__ == "__main__":
    key = jax.random.PRNGKey(0)
    batch = 8

    # Deterministic parameters (as in LNN1.__init__):
    #   linear_1.weight = [[-1, 1]]  (passed as its single row)
    #   bn_1 affine params at default init: gamma = 1, beta = 0
    w = jnp.array([-1.0, 1.0], dtype=jnp.float32)              # (INPUT_SIZE,)
    gamma = jnp.ones((INPUT_SIZE,), dtype=jnp.float32)
    beta = jnp.zeros((INPUT_SIZE,), dtype=jnp.float32)

    # The module flattens whatever comes in to (N, input_size); feed it already
    # in that shape.
    x = jax.random.normal(key, (batch, INPUT_SIZE), dtype=jnp.float32)

    # BN path (args.bn == True)
    logits = jax.block_until_ready(lnn1_forward(x, w, gamma, beta, use_bn=True))
    ref = lnn1_reference(x, w, gamma, beta, use_bn=True)
    assert logits.shape == (batch, 1), logits.shape
    assert jnp.allclose(logits, ref, atol=1e-5, rtol=1e-5), (logits, ref)

    # no-BN path (args.bn == False)
    logits2 = jax.block_until_ready(lnn1_forward(x, w, gamma, beta, use_bn=False))
    ref2 = lnn1_reference(x, w, gamma, beta, use_bn=False)
    assert logits2.shape == (batch, 1), logits2.shape
    assert jnp.allclose(logits2, ref2, atol=1e-5, rtol=1e-5), (logits2, ref2)

    print("KERNEL_OK")
</pallas_src>

<mosaic_0001>
module attributes {stable_mosaic.version = 11 : i64} {
  func.func @_lnn1_bn_kernel(%arg0: memref<2xf32, #tpu.memory_space<smem>>, %arg1: memref<1xf32, #tpu.memory_space<smem>>, %arg2: memref<2x8xf32, #tpu.memory_space<vmem>>, %arg3: memref<1x8xf32, #tpu.memory_space<vmem>>) attributes {dimension_semantics = [], scalar_prefetch = 0 : i64, scratch_operands = 0 : i64, tpu.core_type = #tpu.core_type<tc>} {
    %cst = arith.constant 0.000000e+00 : f32
    %0 = vector.broadcast %cst : f32 to vector<1x8xf32>
    %c0 = arith.constant 0 : index
    %c0_0 = arith.constant 0 : index
    %1 = vector.load %arg2[%c0, %c0_0] : memref<2x8xf32, #tpu.memory_space<vmem>>, vector<1x8xf32>
    %cst_1 = arith.constant dense<0.000000e+00> : vector<1xf32>
    %2 = vector.multi_reduction <add>, %1, %cst_1 [1] : vector<1x8xf32> to vector<1xf32>
    %3 = vector.shape_cast %2 : vector<1xf32> to vector<1x1xf32>
    %cst_2 = arith.constant 1.250000e-01 : f32
    %4 = vector.broadcast %cst_2 : f32 to vector<1x1xf32>
    %5 = arith.mulf %3, %4 : vector<1x1xf32>
    %6 = vector.broadcast %5 : vector<1x1xf32> to vector<1x8xf32>
    %7 = arith.subf %1, %6 : vector<1x8xf32>
    %8 = arith.mulf %7, %7 : vector<1x8xf32>
    %cst_3 = arith.constant dense<0.000000e+00> : vector<1xf32>
    %9 = vector.multi_reduction <add>, %8, %cst_3 [1] : vector<1x8xf32> to vector<1xf32>
    %10 = vector.shape_cast %9 : vector<1xf32> to vector<1x1xf32>
    %cst_4 = arith.constant 1.250000e-01 : f32
    %11 = vector.broadcast %cst_4 : f32 to vector<1x1xf32>
    %12 = arith.mulf %10, %11 : vector<1x1xf32>
    %13 = math.rsqrt %12 : vector<1x1xf32>
    %c0_5 = arith.constant 0 : index
    %14 = memref.load %arg0[%c0_5] : memref<2xf32, #tpu.memory_space<smem>>
    %15 = vector.broadcast %14 : f32 to vector<1x1xf32>
    %16 = arith.mulf %13, %15 : vector<1x1xf32>
    %17 = vector.broadcast %16 : vector<1x1xf32> to vector<1x8xf32>
    %18 = arith.mulf %7, %17 : vector<1x8xf32>
    %19 = arith.addf %0, %18 : vector<1x8xf32>
    %c1 = arith.constant 1 : index
    %c0_6 = arith.constant 0 : index
    %20 = vector.load %arg2[%c1, %c0_6] : memref<2x8xf32, #tpu.memory_space<vmem>>, vector<1x8xf32>
    %cst_7 = arith.constant dense<0.000000e+00> : vector<1xf32>
    %21 = vector.multi_reduction <add>, %20, %cst_7 [1] : vector<1x8xf32> to vector<1xf32>
    %22 = vector.shape_cast %21 : vector<1xf32> to vector<1x1xf32>
    %cst_8 = arith.constant 1.250000e-01 : f32
    %23 = vector.broadcast %cst_8 : f32 to vector<1x1xf32>
    %24 = arith.mulf %22, %23 : vector<1x1xf32>
    %25 = vector.broadcast %24 : vector<1x1xf32> to vector<1x8xf32>
    %26 = arith.subf %20, %25 : vector<1x8xf32>
    %27 = arith.mulf %26, %26 : vector<1x8xf32>
    %cst_9 = arith.constant dense<0.000000e+00> : vector<1xf32>
    %28 = vector.multi_reduction <add>, %27, %cst_9 [1] : vector<1x8xf32> to vector<1xf32>
    %29 = vector.shape_cast %28 : vector<1xf32> to vector<1x1xf32>
    %cst_10 = arith.constant 1.250000e-01 : f32
    %30 = vector.broadcast %cst_10 : f32 to vector<1x1xf32>
    %31 = arith.mulf %29, %30 : vector<1x1xf32>
    %32 = math.rsqrt %31 : vector<1x1xf32>
    %c1_11 = arith.constant 1 : index
    %33 = memref.load %arg0[%c1_11] : memref<2xf32, #tpu.memory_space<smem>>
    %34 = vector.broadcast %33 : f32 to vector<1x1xf32>
    %35 = arith.mulf %32, %34 : vector<1x1xf32>
    %36 = vector.broadcast %35 : vector<1x1xf32> to vector<1x8xf32>
    %37 = arith.mulf %26, %36 : vector<1x8xf32>
    %38 = arith.addf %19, %37 : vector<1x8xf32>
    %c0_12 = arith.constant 0 : index
    %39 = memref.load %arg1[%c0_12] : memref<1xf32, #tpu.memory_space<smem>>
    %40 = vector.broadcast %39 : f32 to vector<1x8xf32>
    %41 = arith.addf %38, %40 : vector<1x8xf32>
    %c0_13 = arith.constant 0 : index
    %c0_14 = arith.constant 0 : index
    %42 = vector.load %arg3[%c0_13, %c0_14] : memref<1x8xf32, #tpu.memory_space<vmem>>, vector<1x8xf32>
    tpu.vector_store %arg3[%c0_13, %c0_14], %41 {strides = array<i32>} : memref<1x8xf32, #tpu.memory_space<vmem>>, vector<1x8xf32>,
    return
  }
}

</mosaic_0001>

<llo_original>
// kernel: tpu_custom_call.1
$region0: #{tpu_custom_call.1}
  #allocation0 [shape = 'u32[]', space=smem, size = 0x4, offset = 0x4, fixed_abs, tag = 'smem constant byte address 0x4 - core index']
  #allocation1 [shape = 'u32[144,128]{1,0:T(1,128)}', space=vmem, size = 0x12000, scoped, tag = 'internal scratch']
  #allocation2 [shape = 'f32[1]{0:T(128)S(6)}', space=smem, size = 0x200, scoped, tag = 'scoped memory for tpu_custom_call.1']
  %s0 = inlined_call_operand.vmem [shape: f32[2], index: 0, kind: input, shape index: {}]
  %s1 = inlined_call_operand.<no memory space> [shape: f32[1], index: 1, kind: input, shape index: {}]
  %s2 = inlined_call_operand.vmem [shape: f32[2,8], index: 2, kind: input, shape index: {}]
  %s3 = inlined_call_operand.hbm [shape: f32[1,8], index: 3, kind: output, shape index: {}]
  %s4 = sld [smem:[#allocation0]]
  $region26: #{tpu_custom_call.1} parent=0
    _
  %s6 = ssub.s32 1, %s4
  %s7 = scalar_select 0, %s6, %s4
  %8 = sst [smem:[#allocation2]] %s1
  $region1: #{tpu_custom_call.1} parent=0
    #allocation3 [shape = 'u8[512]{0}', space=smem, size = 0x200, scoped, tag = 'input window, operand 0, single buffered']
    #allocation4 [shape = 's32[1]{0}', space=sflag, size = 0x4, scoped, tag = 'scoped memory for tpu_custom_call.1']
    #allocation5 [shape = 's32[1]{0}', space=sflag, size = 0x4, scoped, tag = 'scoped memory for tpu_custom_call.1']
    #allocation6 [shape = 'u8[512]{0}', space=vmem, size = 0x400, scoped, tag = 'output window, operand 0, single buffered']
    %9 = vsyncpa [#allocation5], 0
    %10 = vsyncpa [#allocation4], 0
    // Predicated region
    $region2: #{tpu_custom_call.1} parent=1 // pred_check
      _
    $region3: #{tpu_custom_call.1} parent=1 // pred_check_branch
      %12 = sbr.rel (0) target = $region5
    $region4: #{tpu_custom_call.1} parent=1 // pred_region
      %s14 = ssub.s32 16, 16
      %15 = vsyncadd [#allocation5], %s14
      %s17 = sshll.u32 %s0, 4
      %s18 = int_to_ptr.vmem [resolvable:$true] %s17
      %20 = dma.vmem_to_smem %s18, 16, [#allocation3], [#allocation5]
    $region5: #{tpu_custom_call.1} parent=1 // pred_fallthru
      _
    // Predicated region
    $region6: #{tpu_custom_call.1} parent=1 // pred_check
      _
    $region7: #{tpu_custom_call.1} parent=1 // pred_check_branch
      %22 = sbr.rel (0) target = $region9
    $region8: #{tpu_custom_call.1} parent=1 // pred_region
      _
    $region9: #{tpu_custom_call.1} parent=1 // pred_fallthru
      _
    // Predicated region
    $region10: #{tpu_custom_call.1} parent=1 // pred_check
      _
    $region11: #{tpu_custom_call.1} parent=1 // pred_check_branch
      %24 = sbr.rel (0) target = $region13
    $region12: #{tpu_custom_call.1} parent=1 // pred_region
      _
    $region13: #{tpu_custom_call.1} parent=1 // pred_fallthru
      _
    // Predicated region
    $region14: #{tpu_custom_call.1} parent=1 // pred_check
      _
    $region15: #{tpu_custom_call.1} parent=1 // pred_check_branch
      %26 = sbr.rel (0) target = $region17
    $region16: #{tpu_custom_call.1} parent=1 // pred_region
      %27 = dma.done [#allocation5], 16
    $region17: #{tpu_custom_call.1} parent=1 // pred_fallthru
      _
    %28 = sfence
    %v29 = vld [vmem:[%s2] sm:$0x1]
    %vm30 = vcmask 57344
    %v31 = vsel %vm30, %v29, 0.0
    %32 = vadd.xlane.f32.xlu0 %v31
    %v33 = vpop.xlane.xlu0 %32
    %v34 = vmul.f32 %v33, 0.125
    %v35 = vsub.f32 %v29, %v34
    %v36 = vmul.f32 %v35, %v35
    %v37 = vsel %vm30, %v36, 0.0
    %38 = vadd.xlane.f32.xlu0 %v37
    %v39 = vpop.xlane.xlu0 %38
    %v40 = vmul.f32 %v39, 0.125
    %v41 = vrsqrt.pop %v40
    %s42 = sld [smem:[#allocation3]]
    %v43 = vstv %s42
    %v44 = vmul.f32 %v41, %v43
    %v45 = vmul.f32 %v35, %v44
    %v46 = vadd.f32 %v45, 0.0
    %v47 = vld [vmem:[%s2 + $0x1] sm:$0x1]
    %v48 = vsel %vm30, %v47, 0.0
    %49 = vadd.xlane.f32.xlu0 %v48
    %v50 = vpop.xlane.xlu0 %49
    %v51 = vmul.f32 %v50, 0.125
    %v52 = vsub.f32 %v47, %v51
    %v53 = vmul.f32 %v52, %v52
    %v54 = vsel %vm30, %v53, 0.0
    %55 = vadd.xlane.f32.xlu0 %v54
    %v56 = vpop.xlane.xlu0 %55
    %v57 = vmul.f32 %v56, 0.125
    %v58 = vrsqrt.pop %v57
    %s59 = sld [smem:[#allocation3 + $0x1]]
    %v60 = vstv %s59
    %v61 = vmul.f32 %v58, %v60
    %v62 = vmul.f32 %v52, %v61
    %v63 = vadd.f32 %v46, %v62
    %s64 = sld [smem:[#allocation2]]
    %v65 = vstv %s64
    %v66 = vadd.f32 %v63, %v65
    %67 = vst.msk [vmem:[#allocation6] sm:$0x1] %vm30, %v66
    // Predicated region
    $region18: #{tpu_custom_call.1} parent=1 // pred_check
      _
    $region19: #{tpu_custom_call.1} parent=1 // pred_check_branch
      %69 = sbr.rel (0) target = $region21
    $region20: #{tpu_custom_call.1} parent=1 // pred_region
      %s71 = ssub.s32 16, 16
      %72 = vsyncadd [#allocation4], %s71
      %s74 = sshll.u32 [#allocation6], 4
      %s75 = int_to_ptr.vmem [resolvable:$true] %s74
      %77 = dma.vmem_to_hbm [thread:$0]  %s75, 16, %s3, [#allocation4]
    $region21: #{tpu_custom_call.1} parent=1 // pred_fallthru
      _
    // Predicated region
    $region22: #{tpu_custom_call.1} parent=1 // pred_check
      _
    $region23: #{tpu_custom_call.1} parent=1 // pred_check_branch
      %79 = sbr.rel (0) target = $region25
    $region24: #{tpu_custom_call.1} parent=1 // pred_region
      %80 = dma.done [#allocation4], 16
    $region25: #{tpu_custom_call.1} parent=1 // pred_fallthru
      _
    %81 = vsyncpa [#allocation4], 1
    %82 = vsyncpa [#allocation5], 1

</llo_original>
